<compile_context>
chip_gen: v7x
topology: tpu7x:2x2x1
jax: 0.10.0
libtpu: 0.0.40
codegen_flags: <defaults>
</compile_context>

<pallas_src>
from functools import partial

import jax
import jax.numpy as jnp
from jax.experimental import pallas as pl
from jax.experimental.pallas import tpu as pltpu

PAD = 128          # lane-dense feature width for hidden/output layers
NUM_LAYERS = 4


def mlp_kernel(x_ref, w1_ref, w_ref, b_ref, o_ref):
    # x_ref : (TB, F_pad)        native-width input tile (f32)
    # w1_ref: (F_pad, 128)       layer-1 weight (compute dtype)
    # w_ref : (3, 128, 128)      layers 2..4 weights (compute dtype)
    # b_ref : (4, 128)           all biases (f32)
    # o_ref : (TB, 128)          output tile (f32)
    compute_dtype = w1_ref.dtype

    # Layer 1: K = native feature width (no 128-lane padding of the input).
    h = jnp.dot(x_ref[...].astype(compute_dtype), w1_ref[...],
                preferred_element_type=jnp.float32)
    h = jnp.maximum(h + b_ref[0:1, :], 0.0)

    # Layers 2..4 (static unroll -> 3 more MXU matmuls, f32 accumulation).
    for l in range(NUM_LAYERS - 1):
        h = jnp.dot(h.astype(compute_dtype), w_ref[l],
                    preferred_element_type=jnp.float32)
        h = jnp.maximum(h + b_ref[l + 1:l + 2, :], 0.0)

    o_ref[...] = h.astype(o_ref.dtype)


def _round_up(n, m):
    return ((n + m - 1) // m) * m


def _batch_tiling(B):
    """Pick (tile_rows, padded_batch).  Always a multiple of 8 sublanes.
    For small/medium batches force exactly 2 grid steps (v7x megacore);
    for large batches use 512-row tiles (~85% of HBM roofline vs ~29% at 128)."""
    TB_MAX = 512
    if B <= 2 * TB_MAX:
        TB = _round_up(max(-(-B // 2), 8), 8)
        return TB, 2 * TB
    TB = TB_MAX
    return TB, _round_up(B, TB)


def pack_params(params, compute_dtype=jnp.bfloat16):
    """One-time packing (do NOT call per forward):
       - layer-1 weight kept at native input width, padded only to (F_pad, 128)
       - layers 2..4 weights zero-padded to (128, 128) and stacked (one DMA)
       - all biases zero-padded to (128,) and stacked (one DMA, kept f32)
    Zero padding keeps the math identical to the unpadded network."""
    (w1, b1), *rest = params
    in_dim, out1 = w1.shape
    f_pad = _round_up(in_dim, 8)                       # f32 sublane multiple

    w1_p = (jnp.zeros((f_pad, PAD), jnp.float32)
            .at[:in_dim, :out1].set(w1).astype(compute_dtype))

    w_stack, b_stack = [], [jnp.zeros((PAD,), jnp.float32).at[:out1].set(b1)]
    for (w, b) in rest:
        i, o = w.shape
        w_stack.append(jnp.zeros((PAD, PAD), jnp.float32)
                       .at[:i, :o].set(w).astype(compute_dtype))
        b_stack.append(jnp.zeros((PAD,), jnp.float32).at[:o].set(b))

    return w1_p, jnp.stack(w_stack), jnp.stack(b_stack)


@partial(jax.jit, static_argnames=("out_dim",))
def mlp_forward(x, w1_p, w_stack, b_stack, *, out_dim):
    B, F = x.shape
    f_pad = w1_p.shape[0]
    TB, Bp = _batch_tiling(B)

    # Only pad when actually required (extra rows are zeros and sliced off).
    x_p = x
    if (Bp != B) or (f_pad != F):
        x_p = jnp.zeros((Bp, f_pad), x.dtype).at[:B, :F].set(x)

    out_padded = pl.pallas_call(
        mlp_kernel,
        out_shape=jax.ShapeDtypeStruct((Bp, PAD), jnp.float32),
        grid=(Bp // TB,),
        in_specs=[
            pl.BlockSpec((TB, f_pad), lambda i: (i, 0)),          # x tile (pipelined)
            pl.BlockSpec((f_pad, PAD), lambda i: (0, 0)),         # layer-1 W, resident
            pl.BlockSpec((NUM_LAYERS - 1, PAD, PAD),
                         lambda i: (0, 0, 0)),                    # layers 2..4 W, resident
            pl.BlockSpec((NUM_LAYERS, PAD), lambda i: (0, 0)),    # biases, resident
        ],
        out_specs=pl.BlockSpec((TB, PAD), lambda i: (i, 0)),
        compiler_params=pltpu.CompilerParams(
            dimension_semantics=("parallel",)),                   # megacore on v7x
    )(x_p, w1_p, w_stack, b_stack)

    # Contract of this wrapper is a (B, out_dim) result; consumers that can
    # take the padded (Bp, 128) buffer should do so and slice lazily instead.
    return out_padded[:B, :out_dim]


def init_linear(key, in_dim, out_dim):
    # Mimic PyTorch nn.Linear default init: uniform(-1/sqrt(in), 1/sqrt(in)).
    kw, kb = jax.random.split(key)
    bound = 1.0 / jnp.sqrt(jnp.float32(in_dim))
    w = jax.random.uniform(kw, (in_dim, out_dim), jnp.float32, -bound, bound)
    b = jax.random.uniform(kb, (out_dim,), jnp.float32, -bound, bound)
    return w, b


if __name__ == "__main__":
    feature_size = 32
    out_results = 10
    batch = 8

    key = jax.random.PRNGKey(0)
    k_x, k1, k2, k3, k4 = jax.random.split(key, 5)

    x = jax.random.normal(k_x, (batch, feature_size), jnp.float32)
    params = (
        init_linear(k1, feature_size, 60),
        init_linear(k2, 60, 75),
        init_linear(k3, 75, 90),
        init_linear(k4, 90, out_results),
    )

    # Reference: same math as the PyTorch forward (ReLU after every layer,
    # including the output layer, as in the original nn.Module).
    ref = x
    for (w, b) in params:
        ref = jnp.maximum(ref @ w + b[None, :], 0.0)

    # --- f32 path (exact check) -------------------------------------------
    packed_f32 = pack_params(params, compute_dtype=jnp.float32)   # hoisted, reused
    out_f32 = jax.block_until_ready(
        mlp_forward(x, *packed_f32, out_dim=out_results))
    assert out_f32.shape == (batch, out_results)
    assert jnp.allclose(out_f32, ref, atol=1e-5, rtol=1e-5)

    # --- bf16-matmul path (MXU-native on v6e/v7x, f32 accumulation) --------
    packed_bf16 = pack_params(params, compute_dtype=jnp.bfloat16)  # hoisted, reused
    out_bf16 = jax.block_until_ready(
        mlp_forward(x, *packed_bf16, out_dim=out_results))
    assert out_bf16.shape == (batch, out_results)
    assert jnp.allclose(out_bf16, ref, atol=5e-2, rtol=5e-2)

    print("KERNEL_OK")
</pallas_src>

<mosaic_0001>
module attributes {stable_mosaic.version = 11 : i64} {
  func.func @mlp_kernel(%arg0: i32, %arg1: memref<8x32xf32, #tpu.memory_space<vmem>>, %arg2: memref<32x128xf32, #tpu.memory_space<vmem>>, %arg3: memref<3x128x128xf32, #tpu.memory_space<vmem>>, %arg4: memref<4x128xf32, #tpu.memory_space<vmem>>, %arg5: memref<8x128xf32, #tpu.memory_space<vmem>>) attributes {dimension_semantics = [#tpu.dimension_semantics<parallel>], iteration_bounds = array<i64: 2>, scalar_prefetch = 0 : i64, scratch_operands = 0 : i64, tpu.core_type = #tpu.core_type<tc>, window_params = [{transform_indices = @transform_0, window_bounds = array<i64: 8, 32>}, {pipeline_mode = #tpu.pipeline_mode<synchronous>, transform_indices = @transform_1, window_bounds = array<i64: 32, 128>}, {pipeline_mode = #tpu.pipeline_mode<synchronous>, transform_indices = @transform_2, window_bounds = array<i64: 3, 128, 128>}, {pipeline_mode = #tpu.pipeline_mode<synchronous>, transform_indices = @transform_3, window_bounds = array<i64: 4, 128>}, {transform_indices = @transform_4, window_bounds = array<i64: 8, 128>}]} {
    %c0 = arith.constant 0 : index
    %c0_0 = arith.constant 0 : index
    %0 = vector.load %arg1[%c0, %c0_0] : memref<8x32xf32, #tpu.memory_space<vmem>>, vector<8x32xf32>
    %c0_1 = arith.constant 0 : index
    %c0_2 = arith.constant 0 : index
    %1 = vector.load %arg2[%c0_1, %c0_2] : memref<32x128xf32, #tpu.memory_space<vmem>>, vector<32x128xf32>
    %cst = arith.constant dense<0.000000e+00> : vector<8x128xf32>
    %2 = tpu.matmul %0, %1, %cst {dimension_numbers = #tpu.dot_dimension_numbers<[1], [0], [0], [1], [0, 0, 1, 1], [], []>} : vector<8x32xf32>, vector<32x128xf32>, vector<8x128xf32> -> vector<8x128xf32>
    %c0_3 = arith.constant 0 : index
    %c0_4 = arith.constant 0 : index
    %3 = vector.load %arg4[%c0_3, %c0_4] : memref<4x128xf32, #tpu.memory_space<vmem>>, vector<1x128xf32>
    %4 = vector.broadcast %3 : vector<1x128xf32> to vector<8x128xf32>
    %5 = arith.addf %2, %4 : vector<8x128xf32>
    %cst_5 = arith.constant 0.000000e+00 : f32
    %6 = vector.broadcast %cst_5 : f32 to vector<8x128xf32>
    %7 = arith.maximumf %5, %6 : vector<8x128xf32>
    %c0_6 = arith.constant 0 : index
    %c0_7 = arith.constant 0 : index
    %c0_8 = arith.constant 0 : index
    %8 = vector.load %arg3[%c0_6, %c0_7, %c0_8] : memref<3x128x128xf32, #tpu.memory_space<vmem>>, vector<1x128x128xf32>
    %9 = vector.shape_cast %8 : vector<1x128x128xf32> to vector<128x128xf32>
    %cst_9 = arith.constant dense<0.000000e+00> : vector<8x128xf32>
    %10 = tpu.matmul %7, %9, %cst_9 {dimension_numbers = #tpu.dot_dimension_numbers<[1], [0], [0], [1], [0, 0, 1, 1], [], []>} : vector<8x128xf32>, vector<128x128xf32>, vector<8x128xf32> -> vector<8x128xf32>
    %c1 = arith.constant 1 : index
    %c0_10 = arith.constant 0 : index
    %11 = vector.load %arg4[%c1, %c0_10] : memref<4x128xf32, #tpu.memory_space<vmem>>, vector<1x128xf32>
    %12 = vector.broadcast %11 : vector<1x128xf32> to vector<8x128xf32>
    %13 = arith.addf %10, %12 : vector<8x128xf32>
    %cst_11 = arith.constant 0.000000e+00 : f32
    %14 = vector.broadcast %cst_11 : f32 to vector<8x128xf32>
    %15 = arith.maximumf %13, %14 : vector<8x128xf32>
    %c1_12 = arith.constant 1 : index
    %c0_13 = arith.constant 0 : index
    %c0_14 = arith.constant 0 : index
    %16 = vector.load %arg3[%c1_12, %c0_13, %c0_14] : memref<3x128x128xf32, #tpu.memory_space<vmem>>, vector<1x128x128xf32>
    %17 = vector.shape_cast %16 : vector<1x128x128xf32> to vector<128x128xf32>
    %cst_15 = arith.constant dense<0.000000e+00> : vector<8x128xf32>
    %18 = tpu.matmul %15, %17, %cst_15 {dimension_numbers = #tpu.dot_dimension_numbers<[1], [0], [0], [1], [0, 0, 1, 1], [], []>} : vector<8x128xf32>, vector<128x128xf32>, vector<8x128xf32> -> vector<8x128xf32>
    %c2 = arith.constant 2 : index
    %c0_16 = arith.constant 0 : index
    %19 = vector.load %arg4[%c2, %c0_16] : memref<4x128xf32, #tpu.memory_space<vmem>>, vector<1x128xf32>
    %20 = vector.broadcast %19 : vector<1x128xf32> to vector<8x128xf32>
    %21 = arith.addf %18, %20 : vector<8x128xf32>
    %cst_17 = arith.constant 0.000000e+00 : f32
    %22 = vector.broadcast %cst_17 : f32 to vector<8x128xf32>
    %23 = arith.maximumf %21, %22 : vector<8x128xf32>
    %c2_18 = arith.constant 2 : index
    %c0_19 = arith.constant 0 : index
    %c0_20 = arith.constant 0 : index
    %24 = vector.load %arg3[%c2_18, %c0_19, %c0_20] : memref<3x128x128xf32, #tpu.memory_space<vmem>>, vector<1x128x128xf32>
    %25 = vector.shape_cast %24 : vector<1x128x128xf32> to vector<128x128xf32>
    %cst_21 = arith.constant dense<0.000000e+00> : vector<8x128xf32>
    %26 = tpu.matmul %23, %25, %cst_21 {dimension_numbers = #tpu.dot_dimension_numbers<[1], [0], [0], [1], [0, 0, 1, 1], [], []>} : vector<8x128xf32>, vector<128x128xf32>, vector<8x128xf32> -> vector<8x128xf32>
    %c3 = arith.constant 3 : index
    %c0_22 = arith.constant 0 : index
    %27 = vector.load %arg4[%c3, %c0_22] : memref<4x128xf32, #tpu.memory_space<vmem>>, vector<1x128xf32>
    %28 = vector.broadcast %27 : vector<1x128xf32> to vector<8x128xf32>
    %29 = arith.addf %26, %28 : vector<8x128xf32>
    %cst_23 = arith.constant 0.000000e+00 : f32
    %30 = vector.broadcast %cst_23 : f32 to vector<8x128xf32>
    %31 = arith.maximumf %29, %30 : vector<8x128xf32>
    %c0_24 = arith.constant 0 : index
    %c0_25 = arith.constant 0 : index
    %32 = vector.load %arg5[%c0_24, %c0_25] : memref<8x128xf32, #tpu.memory_space<vmem>>, vector<8x128xf32>
    tpu.vector_store %arg5[%c0_24, %c0_25], %31 {strides = array<i32>} : memref<8x128xf32, #tpu.memory_space<vmem>>, vector<8x128xf32>,
    return
  }
  func.func @transform_0(%arg0: i32) -> (i32, i32) {
    %c0_i32 = arith.constant 0 : i32
    %c0_i32_0 = arith.constant 0 : i32
    return %arg0, %c0_i32 : i32, i32
  }
  func.func @transform_1(%arg0: i32) -> (i32, i32) {
    %c0_i32 = arith.constant 0 : i32
    %c0_i32_0 = arith.constant 0 : i32
    %c0_i32_1 = arith.constant 0 : i32
    return %c0_i32, %c0_i32_0 : i32, i32
  }
  func.func @transform_2(%arg0: i32) -> (i32, i32, i32) {
    %c0_i32 = arith.constant 0 : i32
    %c0_i32_0 = arith.constant 0 : i32
    %c0_i32_1 = arith.constant 0 : i32
    %c0_i32_2 = arith.constant 0 : i32
    return %c0_i32, %c0_i32_0, %c0_i32_1 : i32, i32, i32
  }
  func.func @transform_3(%arg0: i32) -> (i32, i32) {
    %c0_i32 = arith.constant 0 : i32
    %c0_i32_0 = arith.constant 0 : i32
    %c0_i32_1 = arith.constant 0 : i32
    return %c0_i32, %c0_i32_0 : i32, i32
  }
  func.func @transform_4(%arg0: i32) -> (i32, i32) {
    %c0_i32 = arith.constant 0 : i32
    %c0_i32_0 = arith.constant 0 : i32
    return %arg0, %c0_i32 : i32, i32
  }
}

</mosaic_0001>

<llo_original>
// kernel: mlp_forward.1
$region0: #{mlp_forward.1}
  #allocation0 [shape = 'u32[]', space=smem, size = 0x4, offset = 0x4, fixed_abs, tag = 'smem constant byte address 0x4 - core index']
  #allocation1 [shape = 'u32[144,128]{1,0:T(1,128)}', space=vmem, size = 0x12000, scoped, tag = 'internal scratch']
  %s0 = inlined_call_operand.vmem [shape: f32[16,32], index: 0, kind: input, shape index: {}]
  %s1 = inlined_call_operand.hbm [shape: f32[32,128], index: 1, kind: input, shape index: {}]
  %s2 = inlined_call_operand.hbm [shape: f32[3,128,128], index: 2, kind: input, shape index: {}]
  %s3 = inlined_call_operand.vmem [shape: f32[4,128], index: 3, kind: input, shape index: {}]
  %s4 = inlined_call_operand.vmem [shape: f32[16,128], index: 4, kind: output, shape index: {}]
  %s5 = sld [smem:[#allocation0]]
  $region57: #{mlp_forward.1} parent=0
    _
  %s7 = ssub.s32 1, %s5
  %s8 = scalar_select 0, %s7, %s5
  $region1: #{mlp_forward.1} parent=0
    #allocation2 [shape = 'u8[16384]{0}', space=vmem, size = 0x4000, scoped, tag = 'input window, operand 1, single buffered']
    #allocation3 [shape = 's32[2]{0}', space=sflag, size = 0x8, scoped, tag = 'scoped memory for mlp_forward.1']
    #allocation4 [shape = 'u8[196608]{0}', space=vmem, size = 0x30000, scoped, tag = 'input window, operand 2, single buffered']
    #allocation5 [shape = 's32[1]{0}', space=sflag, size = 0x4, scoped, tag = 'scoped memory for mlp_forward.1']
    %9 = vsyncpa [#allocation3], 0
    %10 = vsyncpa [#allocation5], 0
    loop: start=0, step=1, limit=4
    $region2: #{mlp_forward.1} parent=1 // loop_pre_header
      _
    $region3: #{mlp_forward.1} parent=1 // loop_header
      %s12 = sphi 0, %s16
      %p13 = scmp.ge.s32.totalorder %s12, 4
      %s22 = sphi 0, %s24
      %s25 = sphi 0, %s22
      %s26 = sphi 0, %s25
      %s42 = sphi 0, %s26
      %s46 = sphi 0, %s46
      %s48 = sphi 0, %s46
      %s49 = sphi 0, %s48
      %s63 = sphi 0, %s49
      %s67 = sphi 0, %s67
      %s69 = sphi 0, %s67
      %s70 = sphi 0, %s69
      %s84 = sphi 0, %s70
      %s88 = sphi 0, %s88
      %s90 = sphi 0, %s88
      %s91 = sphi 0, %s90
      %s105 = sphi 0, %s91
      %s111 = sphi 0, %s113
      %s114 = sphi 0, %s111
      %s115 = sphi 0, %s114
      %s131 = sphi 0, %s115
    $region4: #{mlp_forward.1} parent=1 // loop_header_branch
      %15 = sbr.rel (%p13) target = $region8
    $region5: #{mlp_forward.1} parent=1 // loop_body
      %s17 = ssub.s32 %s12, 1
      %s18 = ssub.s32 %s12, 2
      %s19 = sadd.s32 %s12, 1
      %s20 = ssub.s32 %s12, %s19
      %p21 = scmp.eq.s32.totalorder %s20, 0
      %s23 = sadd.s32 %s22, 1
      %s24 = scalar_select %p21, %s22, %s23
      %p27 = pneg %p21
      %p28 = scmp.eq.s32.totalorder %s12, 1
      %p29 = por %p27, %p28
      %p30 = scmp.ne.s32.totalorder %s22, %s25
      %p31 = scmp.eq.s32.totalorder %s12, 0
      %p32 = por %p30, %p31
      %p33 = scmp.ne.s32.totalorder %s22, %s25
      %p34 = scmp.eq.s32.totalorder %s17, 1
      %p35 = por %p33, %p34
      %p36 = scmp.ne.s32.totalorder %s25, %s26
      %p37 = scmp.eq.s32.totalorder %s17, 0
      %p38 = por %p36, %p37
      %p39 = scmp.ne.s32.totalorder %s25, %s26
      %p40 = scmp.eq.s32.totalorder %s18, 1
      %p41 = por %p39, %p40
      %p43 = scmp.ne.s32.totalorder %s26, %s42
      %p44 = scmp.eq.s32.totalorder %s18, 0
      %p45 = por %p43, %p44
      %s47 = sadd.s32 %s46, 1
      %p50 = scmp.eq.s32.totalorder %s12, 1
      %p51 = scmp.ne.s32.totalorder %s46, %s48
      %p52 = scmp.eq.s32.totalorder %s12, 0
      %p53 = por %p51, %p52
      %p54 = scmp.ne.s32.totalorder %s46, %s48
      %p55 = scmp.eq.s32.totalorder %s17, 1
      %p56 = por %p54, %p55
      %p57 = scmp.ne.s32.totalorder %s48, %s49
      %p58 = scmp.eq.s32.totalorder %s17, 0
      %p59 = por %p57, %p58
      %p60 = scmp.ne.s32.totalorder %s48, %s49
      %p61 = scmp.eq.s32.totalorder %s18, 1
      %p62 = por %p60, %p61
      %p64 = scmp.ne.s32.totalorder %s49, %s63
      %p65 = scmp.eq.s32.totalorder %s18, 0
      %p66 = por %p64, %p65
      %s68 = sadd.s32 %s67, 1
      %p71 = scmp.eq.s32.totalorder %s12, 1
      %p72 = scmp.ne.s32.totalorder %s67, %s69
      %p73 = scmp.eq.s32.totalorder %s12, 0
      %p74 = por %p72, %p73
      %p75 = scmp.ne.s32.totalorder %s67, %s69
      %p76 = scmp.eq.s32.totalorder %s17, 1
      %p77 = por %p75, %p76
      %p78 = scmp.ne.s32.totalorder %s69, %s70
      %p79 = scmp.eq.s32.totalorder %s17, 0
      %p80 = por %p78, %p79
      %p81 = scmp.ne.s32.totalorder %s69, %s70
      %p82 = scmp.eq.s32.totalorder %s18, 1
      %p83 = por %p81, %p82
      %p85 = scmp.ne.s32.totalorder %s70, %s84
      %p86 = scmp.eq.s32.totalorder %s18, 0
      %p87 = por %p85, %p86
      %s89 = sadd.s32 %s88, 1
      %p92 = scmp.eq.s32.totalorder %s12, 1
      %p93 = scmp.ne.s32.totalorder %s88, %s90
      %p94 = scmp.eq.s32.totalorder %s12, 0
      %p95 = por %p93, %p94
      %p96 = scmp.ne.s32.totalorder %s88, %s90
      %p97 = scmp.eq.s32.totalorder %s17, 1
      %p98 = por %p96, %p97
      %p99 = scmp.ne.s32.totalorder %s90, %s91
      %p100 = scmp.eq.s32.totalorder %s17, 0
      %p101 = por %p99, %p100
      %p102 = scmp.ne.s32.totalorder %s90, %s91
      %p103 = scmp.eq.s32.totalorder %s18, 1
      %p104 = por %p102, %p103
      %p106 = scmp.ne.s32.totalorder %s91, %s105
      %p107 = scmp.eq.s32.totalorder %s18, 0
      %p108 = por %p106, %p107
      %s109 = ssub.s32 %s12, %s19
      %p110 = scmp.eq.s32.totalorder %s109, 0
      %s112 = sadd.s32 %s111, 1
      %s113 = scalar_select %p110, %s111, %s112
      %p116 = pneg %p110
      %p117 = scmp.eq.s32.totalorder %s12, 1
      %p118 = por %p116, %p117
      %p119 = scmp.ne.s32.totalorder %s111, %s114
      %p120 = scmp.eq.s32.totalorder %s12, 0
      %p121 = por %p119, %p120
      %p122 = scmp.ne.s32.totalorder %s111, %s114
      %p123 = scmp.eq.s32.totalorder %s17, 1
      %p124 = por %p122, %p123
      %p125 = scmp.ne.s32.totalorder %s114, %s115
      %p126 = scmp.eq.s32.totalorder %s17, 0
      %p127 = por %p125, %p126
      %p128 = scmp.ne.s32.totalorder %s114, %s115
      %p129 = scmp.eq.s32.totalorder %s18, 1
      %p130 = por %p128, %p129
      %p132 = scmp.ne.s32.totalorder %s115, %s131
      %p133 = scmp.eq.s32.totalorder %s18, 0
      %p134 = por %p132, %p133
      %p135 = scmp.le.s32.totalorder 1, %s12
      %p136 = scmp.lt.s32.totalorder %s12, 3
      %p137 = pnand %p135, %p136
      %p138 = pneg %p137
      // Predicated region
      $region9: #{mlp_forward.1} parent=5 // pred_check
        _
      $region10: #{mlp_forward.1} parent=5 // pred_check_branch
        %140 = sbr.rel (%p137) target = $region12
      $region11: #{mlp_forward.1} parent=5 // pred_region
        %s141 = ssub.s32 %s12, 1
        // Predicated region
        $region13: #{mlp_forward.1} parent=11 // pred_check
          %p142 = pneg %p59
        $region14: #{mlp_forward.1} parent=11 // pred_check_branch
          %144 = sbr.rel (%p142) target = $region16
        $region15: #{mlp_forward.1} parent=11 // pred_region
          %s146 = ssub.s32 512, 512
          %147 = vsyncadd [#allocation3], %s146
          %s148 = sshll.u32 [#allocation2], 4
          %s149 = int_to_ptr.vmem [resolvable:$true] %s148
          %154 = dma.hbm_to_vmem [thread:$0]  %s1, 512, %s149, [#allocation3], 128, 128, 8
        $region16: #{mlp_forward.1} parent=11 // pred_fallthru
          _
        // Predicated region
        $region17: #{mlp_forward.1} parent=11 // pred_check
          %p155 = pneg %p80
        $region18: #{mlp_forward.1} parent=11 // pred_check_branch
          %157 = sbr.rel (%p155) target = $region20
        $region19: #{mlp_forward.1} parent=11 // pred_region
          %s159 = ssub.s32 6144, 6144
          %160 = vsyncadd [#allocation5], %s159
          %s161 = sshll.u32 [#allocation4], 4
          %s162 = int_to_ptr.vmem [resolvable:$true] %s161
          %167 = dma.hbm_to_vmem [thread:$0]  %s2, 6144, %s162, [#allocation5], 128, 128, 8
        $region20: #{mlp_forward.1} parent=11 // pred_fallthru
          _
        // Predicated region
        $region21: #{mlp_forward.1} parent=11 // pred_check
          %p168 = pneg %p101
        $region22: #{mlp_forward.1} parent=11 // pred_check_branch
          %170 = sbr.rel (%p168) target = $region24
        $region23: #{mlp_forward.1} parent=11 // pred_region
          _
        $region24: #{mlp_forward.1} parent=11 // pred_fallthru
          _
      $region12: #{mlp_forward.1} parent=5 // pred_fallthru
        _
      %p171 = scmp.lt.s32.totalorder %s12, 2
      // Predicated region
      $region25: #{mlp_forward.1} parent=5 // pred_check
        %p172 = pneg %p171
      $region26: #{mlp_forward.1} parent=5 // pred_check_branch
        %174 = sbr.rel (%p172) target = $region28
      $region27: #{mlp_forward.1} parent=5 // pred_region
        // Predicated region
        $region29: #{mlp_forward.1} parent=27 // pred_check
          %p175 = pneg %p32
        $region30: #{mlp_forward.1} parent=27 // pred_check_branch
          %177 = sbr.rel (%p175) target = $region32
        $region31: #{mlp_forward.1} parent=27 // pred_region
          %p178 = scmp.lt.s32.totalorder %s12, 1
          %s179 = scalar_select %p178, %s12, 1
          %s180 = smul.addr %s179, 8
          %s181 = scalar_lea.vmem %s0, %s180
        $region32: #{mlp_forward.1} parent=27 // pred_fallthru
          _
      $region28: #{mlp_forward.1} parent=5 // pred_fallthru
        _
      %p182 = scmp.le.s32.totalorder 1, %s12
      %p183 = scmp.lt.s32.totalorder %s12, 3
      %p184 = pnand %p182, %p183
      %p185 = pneg %p184
      // Predicated region
      $region33: #{mlp_forward.1} parent=5 // pred_check
        _
      $region34: #{mlp_forward.1} parent=5 // pred_check_branch
        %187 = sbr.rel (%p184) target = $region36
      $region35: #{mlp_forward.1} parent=5 // pred_region
        %s188 = ssub.s32 %s12, 1
        // Predicated region
        $region37: #{mlp_forward.1} parent=35 // pred_check
          %p189 = pneg %p59
        $region38: #{mlp_forward.1} parent=35 // pred_check_branch
          %191 = sbr.rel (%p189) target = $region40
        $region39: #{mlp_forward.1} parent=35 // pred_region
          %192 = dma.done [#allocation3], 512
        $region40: #{mlp_forward.1} parent=35 // pred_fallthru
          _
        // Predicated region
        $region41: #{mlp_forward.1} parent=35 // pred_check
          %p193 = pneg %p80
        $region42: #{mlp_forward.1} parent=35 // pred_check_branch
          %195 = sbr.rel (%p193) target = $region44
        $region43: #{mlp_forward.1} parent=35 // pred_region
          %196 = dma.done [#allocation5], 6144
        $region44: #{mlp_forward.1} parent=35 // pred_fallthru
          _
        %p197 = scmp.lt.s32.totalorder %s17, 1
        %s198 = scalar_select %p197, %s17, 1
        %s199 = smul.addr %s198, 8
        %s200 = scalar_lea.vmem %s0, %s199
        %p201 = pneg %p38
        %p202 = pneg %p35
        %p203 = pneg %p59
        %p204 = pneg %p56
        %p205 = pneg %p80
        %p206 = pneg %p77
        %p207 = pneg %p101
        %p208 = pneg %p98
        %p209 = pneg %p127
        %p210 = pneg %p124
        %p211 = scmp.lt.s32.totalorder %s17, 1
        %s212 = scalar_select %p211, %s17, 1
        %s213 = smul.addr %s212, 8
        %s214 = scalar_lea.vmem %s4, %s213
        %p215 = scmp.lt.s32.totalorder %s17, 1
        %s216 = scalar_select %p215, %s17, 1
        %s217 = smul.addr %s216, 8
        %s218 = scalar_lea.vmem %s0, %s217
        %p219 = scmp.lt.s32.totalorder %s17, 1
        %s220 = scalar_select %p219, %s17, 1
        %s221 = smul.addr %s220, 8
        %s222 = scalar_lea.vmem %s4, %s221
        %v223 = vld [vmem:[%s218] sm:$0xff]
        %v224 = vld [vmem:[#allocation2] sm:$0xff]
        %v225 = vld [vmem:[#allocation2 + $0x8] sm:$0xff]
        %v226 = vld [vmem:[#allocation2 + $0x10] sm:$0xff]
        %v227 = vld [vmem:[#allocation2 + $0x18] sm:$0xff]
        %v228 = vld [vmem:[%s3] sm:$0x1]
        %v229 = vlaneseq
        %v230 = vshrl.u32 %v229, 7
        %v231 = vsub.s32 0, %v230
        %v232 = vrot.slane %v228, %v231
        %vm233 = vcmask 261120
        %v235 = vsel %vm233, %v223, 0
        %237 = vmatprep.subr.mxu0 0.0
        %238 = vmatpush1.msra.mxu0 %v224
        %239 = vmatprep.subr.mxu0 0.0
        %240 = vmatpush1.msra.mxu0 %v225
        %241 = vmatprep.subr.mxu0 0.0
        %242 = vmatpush1.msra.mxu0 %v226
        %243 = vmatprep.subr.mxu0 0.0
        %244 = vmatpush1.msra.mxu0 %v227
        %245 = vmatprep.subr.mxu0 0.0
        %246 = vmatpush1.msra.mxu0 0.0
        %247 = vmatprep.subr.mxu0 0.0
        %248 = vmatpush1.msra.mxu0 0.0
        %249 = vmatprep.subr.mxu0 0.0
        %250 = vmatpush1.msra.mxu0 0.0
        %251 = vmatprep.subr.mxu0 0.0
        %252 = vmatpush1.msra.mxu0 0.0
        %253 = vmatprep.subr.mxu0 0.0
        %254 = vmatpush1.msra.mxu0 0.0
        %255 = vmatprep.subr.mxu0 0.0
        %256 = vmatpush1.msra.mxu0 0.0
        %257 = vmatprep.subr.mxu0 0.0
        %258 = vmatpush1.msra.mxu0 0.0
        %259 = vmatprep.subr.mxu0 0.0
        %260 = vmatpush1.msra.mxu0 0.0
        %261 = vmatprep.subr.mxu0 0.0
        %262 = vmatpush1.msra.mxu0 0.0
        %263 = vmatprep.subr.mxu0 0.0
        %264 = vmatpush1.msra.mxu0 0.0
        %265 = vmatprep.subr.mxu0 0.0
        %266 = vmatpush1.msra.mxu0 0.0
        %267 = vmatprep.subr.mxu0 0.0
        %268 = vmatpush1.msra.mxu0 0.0
        %269 = vmatprep.subr.mxu0 0.0
        %270 = vmatpush1.msra.mxu0 0.0
        %271 = vmatprep.subr.mxu0 0.0
        %272 = vmatpush1.msra.mxu0 0.0
        %273 = vmatprep.subr.mxu0 0.0
        %274 = vmatpush1.msra.mxu0 0.0
        %275 = vmatprep.subr.mxu0 0.0
        %276 = vmatpush1.msra.mxu0 0.0
        %277 = vmatprep.subr.mxu0 0.0
        %278 = vmatpush1.msra.mxu0 0.0
        %279 = vmatprep.subr.mxu0 0.0
        %280 = vmatpush1.msra.mxu0 0.0
        %281 = vmatprep.subr.mxu0 0.0
        %282 = vmatpush1.msra.mxu0 0.0
        %283 = vmatprep.subr.mxu0 0.0
        %284 = vmatpush1.msra.mxu0 0.0
        %285 = vmatprep.subr.mxu0 0.0
        %286 = vmatpush1.msra.mxu0 0.0
        %287 = vmatprep.subr.mxu0 0.0
        %288 = vmatpush1.msra.mxu0 0.0
        %289 = vmatprep.subr.mxu0 0.0
        %290 = vmatpush1.msra.mxu0 0.0
        %291 = vmatprep.subr.mxu0 0.0
        %292 = vmatpush1.msra.mxu0 0.0
        %293 = vmatprep.subr.mxu0 0.0
        %294 = vmatpush1.msra.mxu0 0.0
        %295 = vmatprep.subr.mxu0 0.0
        %296 = vmatpush1.msra.mxu0 0.0
        %297 = vmatprep.subr.mxu0 0.0
        %298 = vmatpush1.msra.mxu0 0.0
        %299 = vmatprep.subr.mxu0 0.0
        %300 = vmatpush1.msra.mxu0 0.0
        %301 = vmatprep.mubr.f32.mxu0 0.0
        %302 = vmatmul.mubr.f32.gmra.mrb[0].mxu0 %v235
        %v303 = vpop.f32.mrb[0].mxu0
        %v304 = vadd.f32 %v232, %v303
        %v305 = vpop.f32.mrb[0].mxu0
        %306 = vdwg.mxu0
        %v307 = vmax.f32 %v304, 0.0
        %v308 = vld [vmem:[#allocation4] sm:$0xff]
        %v309 = vld [vmem:[#allocation4 + $0x8] sm:$0xff]
        %v310 = vld [vmem:[#allocation4 + $0x10] sm:$0xff]
        %v311 = vld [vmem:[#allocation4 + $0x18] sm:$0xff]
        %v312 = vld [vmem:[#allocation4 + $0x20] sm:$0xff]
        %v313 = vld [vmem:[#allocation4 + $0x28] sm:$0xff]
        %v314 = vld [vmem:[#allocation4 + $0x30] sm:$0xff]
        %v315 = vld [vmem:[#allocation4 + $0x38] sm:$0xff]
        %v316 = vld [vmem:[#allocation4 + $0x40] sm:$0xff]
        %v317 = vld [vmem:[#allocation4 + $0x48] sm:$0xff]
        %v318 = vld [vmem:[#allocation4 + $0x50] sm:$0xff]
        %v319 = vld [vmem:[#allocation4 + $0x58] sm:$0xff]
        %v320 = vld [vmem:[#allocation4 + $0x60] sm:$0xff]
        %v321 = vld [vmem:[#allocation4 + $0x68] sm:$0xff]
        %v322 = vld [vmem:[#allocation4 + $0x70] sm:$0xff]
        %v323 = vld [vmem:[#allocation4 + $0x78] sm:$0xff]
        %v324 = vld [vmem:[%s3 + $0x1] sm:$0x1]
        %v325 = vlaneseq
        %v326 = vshrl.u32 %v325, 7
        %v327 = vsub.s32 0, %v326
        %v328 = vrot.slane %v324, %v327
        %329 = vmatprep.subr.mxu0 0.0
        %330 = vmatpush1.msra.mxu0 %v308
        %331 = vmatprep.subr.mxu0 0.0
        %332 = vmatpush1.msra.mxu0 %v309
        %333 = vmatprep.subr.mxu0 0.0
        %334 = vmatpush1.msra.mxu0 %v310
        %335 = vmatprep.subr.mxu0 0.0
        %336 = vmatpush1.msra.mxu0 %v311
        %337 = vmatprep.subr.mxu0 0.0
        %338 = vmatpush1.msra.mxu0 %v312
        %339 = vmatprep.subr.mxu0 0.0
        %340 = vmatpush1.msra.mxu0 %v313
        %341 = vmatprep.subr.mxu0 0.0
        %342 = vmatpush1.msra.mxu0 %v314
        %343 = vmatprep.subr.mxu0 0.0
        %344 = vmatpush1.msra.mxu0 %v315
        %345 = vmatprep.subr.mxu0 0.0
        %346 = vmatpush1.msra.mxu0 %v316
        %347 = vmatprep.subr.mxu0 0.0
        %348 = vmatpush1.msra.mxu0 %v317
        %349 = vmatprep.subr.mxu0 0.0
        %350 = vmatpush1.msra.mxu0 %v318
        %351 = vmatprep.subr.mxu0 0.0
        %352 = vmatpush1.msra.mxu0 %v319
        %353 = vmatprep.subr.mxu0 0.0
        %354 = vmatpush1.msra.mxu0 %v320
        %355 = vmatprep.subr.mxu0 0.0
        %356 = vmatpush1.msra.mxu0 %v321
        %357 = vmatprep.subr.mxu0 0.0
        %358 = vmatpush1.msra.mxu0 %v322
        %359 = vmatprep.subr.mxu0 0.0
        %360 = vmatpush1.msra.mxu0 %v323
        %361 = vmatprep.subr.mxu0 0.0
        %362 = vmatpush1.msra.mxu0 0.0
        %363 = vmatprep.subr.mxu0 0.0
        %364 = vmatpush1.msra.mxu0 0.0
        %365 = vmatprep.subr.mxu0 0.0
        %366 = vmatpush1.msra.mxu0 0.0
        %367 = vmatprep.subr.mxu0 0.0
        %368 = vmatpush1.msra.mxu0 0.0
        %369 = vmatprep.subr.mxu0 0.0
        %370 = vmatpush1.msra.mxu0 0.0
        %371 = vmatprep.subr.mxu0 0.0
        %372 = vmatpush1.msra.mxu0 0.0
        %373 = vmatprep.subr.mxu0 0.0
        %374 = vmatpush1.msra.mxu0 0.0
        %375 = vmatprep.subr.mxu0 0.0
        %376 = vmatpush1.msra.mxu0 0.0
        %377 = vmatprep.subr.mxu0 0.0
        %378 = vmatpush1.msra.mxu0 0.0
        %379 = vmatprep.subr.mxu0 0.0
        %380 = vmatpush1.msra.mxu0 0.0
        %381 = vmatprep.subr.mxu0 0.0
        %382 = vmatpush1.msra.mxu0 0.0
        %383 = vmatprep.subr.mxu0 0.0
        %384 = vmatpush1.msra.mxu0 0.0
        %385 = vmatprep.subr.mxu0 0.0
        %386 = vmatpush1.msra.mxu0 0.0
        %387 = vmatprep.subr.mxu0 0.0
        %388 = vmatpush1.msra.mxu0 0.0
        %389 = vmatprep.subr.mxu0 0.0
        %390 = vmatpush1.msra.mxu0 0.0
        %391 = vmatprep.subr.mxu0 0.0
        %392 = vmatpush1.msra.mxu0 0.0
        %393 = vmatprep.mubr.f32.mxu0 0.0
        %394 = vmatmul.mubr.f32.gmra.mrb[0].mxu0 %v307
        %v395 = vpop.f32.mrb[0].mxu0
        %v396 = vadd.f32 %v328, %v395
        %v397 = vpop.f32.mrb[0].mxu0
        %398 = vdwg.mxu0
        %v399 = vmax.f32 %v396, 0.0
        %s400 = scalar_lea.vmem [#allocation4], 128
        %v401 = vld [vmem:[%s400] sm:$0xff]
        %v402 = vld [vmem:[%s400 + $0x8] sm:$0xff]
        %v403 = vld [vmem:[%s400 + $0x10] sm:$0xff]
        %v404 = vld [vmem:[%s400 + $0x18] sm:$0xff]
        %v405 = vld [vmem:[%s400 + $0x20] sm:$0xff]
        %v406 = vld [vmem:[%s400 + $0x28] sm:$0xff]
        %v407 = vld [vmem:[%s400 + $0x30] sm:$0xff]
        %v408 = vld [vmem:[%s400 + $0x38] sm:$0xff]
        %v409 = vld [vmem:[%s400 + $0x40] sm:$0xff]
        %v410 = vld [vmem:[%s400 + $0x48] sm:$0xff]
        %v411 = vld [vmem:[%s400 + $0x50] sm:$0xff]
        %v412 = vld [vmem:[%s400 + $0x58] sm:$0xff]
        %v413 = vld [vmem:[%s400 + $0x60] sm:$0xff]
        %v414 = vld [vmem:[%s400 + $0x68] sm:$0xff]
        %v415 = vld [vmem:[%s400 + $0x70] sm:$0xff]
        %v416 = vld [vmem:[%s400 + $0x78] sm:$0xff]
        %v417 = vld [vmem:[%s3 + $0x2] sm:$0x1]
        %v418 = vlaneseq
        %v419 = vshrl.u32 %v418, 7
        %v420 = vsub.s32 0, %v419
        %v421 = vrot.slane %v417, %v420
        %422 = vmatprep.subr.mxu0 0.0
        %423 = vmatpush1.msra.mxu0 %v401
        %424 = vmatprep.subr.mxu0 0.0
        %425 = vmatpush1.msra.mxu0 %v402
        %426 = vmatprep.subr.mxu0 0.0
        %427 = vmatpush1.msra.mxu0 %v403
        %428 = vmatprep.subr.mxu0 0.0
        %429 = vmatpush1.msra.mxu0 %v404
        %430 = vmatprep.subr.mxu0 0.0
        %431 = vmatpush1.msra.mxu0 %v405
        %432 = vmatprep.subr.mxu0 0.0
        %433 = vmatpush1.msra.mxu0 %v406
        %434 = vmatprep.subr.mxu0 0.0
        %435 = vmatpush1.msra.mxu0 %v407
        %436 = vmatprep.subr.mxu0 0.0
        %437 = vmatpush1.msra.mxu0 %v408
        %438 = vmatprep.subr.mxu0 0.0
        %439 = vmatpush1.msra.mxu0 %v409
        %440 = vmatprep.subr.mxu0 0.0
        %441 = vmatpush1.msra.mxu0 %v410
        %442 = vmatprep.subr.mxu0 0.0
        %443 = vmatpush1.msra.mxu0 %v411
        %444 = vmatprep.subr.mxu0 0.0
        %445 = vmatpush1.msra.mxu0 %v412
        %446 = vmatprep.subr.mxu0 0.0
        %447 = vmatpush1.msra.mxu0 %v413
        %448 = vmatprep.subr.mxu0 0.0
        %449 = vmatpush1.msra.mxu0 %v414
        %450 = vmatprep.subr.mxu0 0.0
        %451 = vmatpush1.msra.mxu0 %v415
        %452 = vmatprep.subr.mxu0 0.0
        %453 = vmatpush1.msra.mxu0 %v416
        %454 = vmatprep.subr.mxu0 0.0
        %455 = vmatpush1.msra.mxu0 0.0
        %456 = vmatprep.subr.mxu0 0.0
        %457 = vmatpush1.msra.mxu0 0.0
        %458 = vmatprep.subr.mxu0 0.0
        %459 = vmatpush1.msra.mxu0 0.0
        %460 = vmatprep.subr.mxu0 0.0
        %461 = vmatpush1.msra.mxu0 0.0
        %462 = vmatprep.subr.mxu0 0.0
        %463 = vmatpush1.msra.mxu0 0.0
        %464 = vmatprep.subr.mxu0 0.0
        %465 = vmatpush1.msra.mxu0 0.0
        %466 = vmatprep.subr.mxu0 0.0
        %467 = vmatpush1.msra.mxu0 0.0
        %468 = vmatprep.subr.mxu0 0.0
        %469 = vmatpush1.msra.mxu0 0.0
        %470 = vmatprep.subr.mxu0 0.0
        %471 = vmatpush1.msra.mxu0 0.0
        %472 = vmatprep.subr.mxu0 0.0
        %473 = vmatpush1.msra.mxu0 0.0
        %474 = vmatprep.subr.mxu0 0.0
        %475 = vmatpush1.msra.mxu0 0.0
        %476 = vmatprep.subr.mxu0 0.0
        %477 = vmatpush1.msra.mxu0 0.0
        %478 = vmatprep.subr.mxu0 0.0
        %479 = vmatpush1.msra.mxu0 0.0
        %480 = vmatprep.subr.mxu0 0.0
        %481 = vmatpush1.msra.mxu0 0.0
        %482 = vmatprep.subr.mxu0 0.0
        %483 = vmatpush1.msra.mxu0 0.0
        %484 = vmatprep.subr.mxu0 0.0
        %485 = vmatpush1.msra.mxu0 0.0
        %486 = vmatprep.mubr.f32.mxu0 0.0
        %487 = vmatmul.mubr.f32.gmra.mrb[0].mxu0 %v399
        %v488 = vpop.f32.mrb[0].mxu0
        %v489 = vadd.f32 %v421, %v488
        %v490 = vpop.f32.mrb[0].mxu0
        %491 = vdwg.mxu0
        %v492 = vmax.f32 %v489, 0.0
        %s493 = scalar_lea.vmem [#allocation4], 256
        %v494 = vld [vmem:[%s493] sm:$0xff]
        %v495 = vld [vmem:[%s493 + $0x8] sm:$0xff]
        %v496 = vld [vmem:[%s493 + $0x10] sm:$0xff]
        %v497 = vld [vmem:[%s493 + $0x18] sm:$0xff]
        %v498 = vld [vmem:[%s493 + $0x20] sm:$0xff]
        %v499 = vld [vmem:[%s493 + $0x28] sm:$0xff]
        %v500 = vld [vmem:[%s493 + $0x30] sm:$0xff]
        %v501 = vld [vmem:[%s493 + $0x38] sm:$0xff]
        %v502 = vld [vmem:[%s493 + $0x40] sm:$0xff]
        %v503 = vld [vmem:[%s493 + $0x48] sm:$0xff]
        %v504 = vld [vmem:[%s493 + $0x50] sm:$0xff]
        %v505 = vld [vmem:[%s493 + $0x58] sm:$0xff]
        %v506 = vld [vmem:[%s493 + $0x60] sm:$0xff]
        %v507 = vld [vmem:[%s493 + $0x68] sm:$0xff]
        %v508 = vld [vmem:[%s493 + $0x70] sm:$0xff]
        %v509 = vld [vmem:[%s493 + $0x78] sm:$0xff]
        %v510 = vld [vmem:[%s3 + $0x3] sm:$0x1]
        %v511 = vlaneseq
        %v512 = vshrl.u32 %v511, 7
        %v513 = vsub.s32 0, %v512
        %v514 = vrot.slane %v510, %v513
        %515 = vmatprep.subr.mxu0 0.0
        %516 = vmatpush1.msra.mxu0 %v494
        %517 = vmatprep.subr.mxu0 0.0
        %518 = vmatpush1.msra.mxu0 %v495
        %519 = vmatprep.subr.mxu0 0.0
        %520 = vmatpush1.msra.mxu0 %v496
        %521 = vmatprep.subr.mxu0 0.0
        %522 = vmatpush1.msra.mxu0 %v497
        %523 = vmatprep.subr.mxu0 0.0
        %524 = vmatpush1.msra.mxu0 %v498
        %525 = vmatprep.subr.mxu0 0.0
        %526 = vmatpush1.msra.mxu0 %v499
        %527 = vmatprep.subr.mxu0 0.0
        %528 = vmatpush1.msra.mxu0 %v500
        %529 = vmatprep.subr.mxu0 0.0
        %530 = vmatpush1.msra.mxu0 %v501
        %531 = vmatprep.subr.mxu0 0.0
        %532 = vmatpush1.msra.mxu0 %v502
        %533 = vmatprep.subr.mxu0 0.0
        %534 = vmatpush1.msra.mxu0 %v503
        %535 = vmatprep.subr.mxu0 0.0
        %536 = vmatpush1.msra.mxu0 %v504
        %537 = vmatprep.subr.mxu0 0.0
        %538 = vmatpush1.msra.mxu0 %v505
        %539 = vmatprep.subr.mxu0 0.0
        %540 = vmatpush1.msra.mxu0 %v506
        %541 = vmatprep.subr.mxu0 0.0
        %542 = vmatpush1.msra.mxu0 %v507
        %543 = vmatprep.subr.mxu0 0.0
        %544 = vmatpush1.msra.mxu0 %v508
        %545 = vmatprep.subr.mxu0 0.0
        %546 = vmatpush1.msra.mxu0 %v509
        %547 = vmatprep.subr.mxu0 0.0
        %548 = vmatpush1.msra.mxu0 0.0
        %549 = vmatprep.subr.mxu0 0.0
        %550 = vmatpush1.msra.mxu0 0.0
        %551 = vmatprep.subr.mxu0 0.0
        %552 = vmatpush1.msra.mxu0 0.0
        %553 = vmatprep.subr.mxu0 0.0
        %554 = vmatpush1.msra.mxu0 0.0
        %555 = vmatprep.subr.mxu0 0.0
        %556 = vmatpush1.msra.mxu0 0.0
        %557 = vmatprep.subr.mxu0 0.0
        %558 = vmatpush1.msra.mxu0 0.0
        %559 = vmatprep.subr.mxu0 0.0
        %560 = vmatpush1.msra.mxu0 0.0
        %561 = vmatprep.subr.mxu0 0.0
        %562 = vmatpush1.msra.mxu0 0.0
        %563 = vmatprep.subr.mxu0 0.0
        %564 = vmatpush1.msra.mxu0 0.0
        %565 = vmatprep.subr.mxu0 0.0
        %566 = vmatpush1.msra.mxu0 0.0
        %567 = vmatprep.subr.mxu0 0.0
        %568 = vmatpush1.msra.mxu0 0.0
        %569 = vmatprep.subr.mxu0 0.0
        %570 = vmatpush1.msra.mxu0 0.0
        %571 = vmatprep.subr.mxu0 0.0
        %572 = vmatpush1.msra.mxu0 0.0
        %573 = vmatprep.subr.mxu0 0.0
        %574 = vmatpush1.msra.mxu0 0.0
        %575 = vmatprep.subr.mxu0 0.0
        %576 = vmatpush1.msra.mxu0 0.0
        %577 = vmatprep.subr.mxu0 0.0
        %578 = vmatpush1.msra.mxu0 0.0
        %579 = vmatprep.mubr.f32.mxu0 0.0
        %580 = vmatmul.mubr.f32.gmra.mrb[0].mxu0 %v492
        %v581 = vpop.f32.mrb[0].mxu0
        %v582 = vadd.f32 %v514, %v581
        %v583 = vpop.f32.mrb[0].mxu0
        %584 = vdwg.mxu0
        %v585 = vmax.f32 %v582, 0.0
        %586 = vst [vmem:[%s222] sm:$0xff] %v585
        %p587 = scmp.lt.s32.totalorder %s17, 1
        %s588 = scalar_select %p587, %s17, 1
        %s589 = smul.addr %s588, 8
        %s590 = scalar_lea.vmem %s4, %s589
        // Predicated region
        $region45: #{mlp_forward.1} parent=35 // pred_check
          %p591 = pneg %p124
        $region46: #{mlp_forward.1} parent=35 // pred_check_branch
          %593 = sbr.rel (%p591) target = $region48
        $region47: #{mlp_forward.1} parent=35 // pred_region
          _
        $region48: #{mlp_forward.1} parent=35 // pred_fallthru
          _
      $region36: #{mlp_forward.1} parent=5 // pred_fallthru
        _
      %p594 = scmp.le.s32.totalorder 2, %s12
      // Predicated region
      $region49: #{mlp_forward.1} parent=5 // pred_check
        %p595 = pneg %p594
      $region50: #{mlp_forward.1} parent=5 // pred_check_branch
        %597 = sbr.rel (%p595) target = $region52
      $region51: #{mlp_forward.1} parent=5 // pred_region
        %s598 = ssub.s32 %s12, 2
        // Predicated region
        $region53: #{mlp_forward.1} parent=51 // pred_check
          %p599 = pneg %p130
        $region54: #{mlp_forward.1} parent=51 // pred_check_branch
          %601 = sbr.rel (%p599) target = $region56
        $region55: #{mlp_forward.1} parent=51 // pred_region
          %p602 = scmp.lt.s32.totalorder %s18, 1
          %s603 = scalar_select %p602, %s18, 1
          %s604 = smul.addr %s603, 8
          %s605 = scalar_lea.vmem %s4, %s604
        $region56: #{mlp_forward.1} parent=51 // pred_fallthru
          _
      $region52: #{mlp_forward.1} parent=5 // pred_fallthru
        _
    $region6: #{mlp_forward.1} parent=1 // loop_footer
      %s16 = sadd.s32 1, %s12
    $region7: #{mlp_forward.1} parent=1 // loop_footer_branch
      %11 = sbr.rel target = $region3
    $region8: #{mlp_forward.1} parent=1 // loop_exit
      _
    %606 = vsyncpa [#allocation3], 1
    %s607 = scalar_lea.sflag [#allocation3], 1
    %608 = vsyncpa %s607, 1
    %609 = vsyncpa [#allocation5], 1

</llo_original>
